<compile_context>
chip_gen: v7x
topology: tpu7x:2x2x1
jax: 0.10.0
libtpu: 0.0.40
codegen_flags: <defaults>
</compile_context>

<pallas_src>
import functools

import jax
import jax.numpy as jnp
from jax.experimental import pallas as pl
from jax.experimental.pallas import tpu as pltpu  # noqa: F401  (TPU backend)

LEAKY_SLOPE = 0.2   # F.leaky_relu(x, 0.2) used by LinearOutputStack
LN_EPS = 1e-5       # nn.LayerNorm default eps


def _linear_block(h, w, bias, gain, beta):
    """Linear -> leaky_relu(0.2) -> LayerNorm(channels) with affine (gain, beta).

    LayerNorm statistics are fused into one pass: E[x] and E[x^2] from a single
    sweep, var = E[x^2] - E[x]^2 (halves the XLU lane-reductions vs. two means).
    """
    h = jnp.dot(h, w, preferred_element_type=jnp.float32) + bias
    h = jnp.where(h > 0, h, LEAKY_SLOPE * h)
    inv_c = 1.0 / h.shape[-1]
    s = jnp.sum(h, axis=-1, keepdims=True)
    sq = jnp.sum(h * h, axis=-1, keepdims=True)
    mu = s * inv_c
    var = sq * inv_c - mu * mu
    h = (h - mu) * jax.lax.rsqrt(var + LN_EPS)
    return h * gain + beta


def generate_mix_kernel(x_ref, w_ref, v_ref, out_ref, *, latent_dim, n_core):
    """Packed-parameter GenerateMix forward.

    w_ref: (2 + n_core, C, C) f32
        slot 0        : w_in   (rows [:latent_dim] used, rest zero-padded)
        slots 1..n    : core weights (C, C)
        slot 1+n_core : w_out  (cols [:mixer_channels] used, rest zero-padded)
    v_ref: (16, C) f32 row-vector parameters
        row 0: b_in, row 1: g_in, row 2: be_in
        rows 3+3l .. 5+3l: core b / gain / beta for layer l
        row 3+3*n_core: b_out (first mixer_channels entries used)
    out_ref: (1, batch * mixer_channels) f32
    """
    h = x_ref[...].astype(jnp.float32)

    # --- input projection block: latent_dim -> channels -------------------------
    w_in = w_ref[0][:latent_dim, :]
    h = _linear_block(h, w_in, v_ref[0:1, :], v_ref[1:2, :], v_ref[2:3, :])

    # --- 3 core blocks: channels -> channels (statically unrolled) --------------
    for l in range(n_core):
        base = 3 + 3 * l
        h = _linear_block(h, w_ref[1 + l],
                          v_ref[base:base + 1, :],
                          v_ref[base + 1:base + 2, :],
                          v_ref[base + 2:base + 3, :])

    # --- output projection: channels -> mixer_channels (padded to C lanes) ------
    # Kept for structural fidelity; its value never reaches the output because the
    # module's softmax is over a size-1 axis, so Mosaic is free to DCE this path.
    b_out_row = 3 + 3 * n_core
    _y = jnp.dot(h, w_ref[1 + n_core],
                 preferred_element_type=jnp.float32) + v_ref[b_out_row:b_out_row + 1, :]
    del _y

    # softmax over the singleton last dim of view(-1, encoding_channels, 1) is
    # exactly 1.0 for every element.
    out_ref[...] = jnp.ones(out_ref.shape, dtype=out_ref.dtype)


def generate_mix(x, packed_w, packed_v, *, latent_dim, n_core,
                 mixer_channels, encoding_channels):
    """x: (batch, latent_dim) f32. Returns (-1, encoding_channels, 1) f32 (all ones)."""
    batch = x.shape[0]
    kernel = functools.partial(generate_mix_kernel,
                               latent_dim=latent_dim, n_core=n_core)
    # No grid, no BlockSpecs: whole (tiny) arrays are placed in VMEM; 3 input DMAs.
    flat = pl.pallas_call(
        kernel,
        out_shape=jax.ShapeDtypeStruct((1, batch * mixer_channels), jnp.float32),
    )(x, packed_w, packed_v)
    # x.view(-1, encoding_channels, 1)
    return flat.reshape(-1, encoding_channels, 1)


def init_packed_params(key, latent_dim, channels, mixer_channels, n_core=3):
    """PyTorch-style uniform(+/-1/sqrt(fan_in)) init, packed into two f32 buffers."""
    ks = jax.random.split(key, n_core + 2)

    def lin(k, fan_in, fan_out):
        bound = 1.0 / jnp.sqrt(jnp.float32(fan_in))
        kw, kb = jax.random.split(k)
        w = jax.random.uniform(kw, (fan_in, fan_out), jnp.float32, -bound, bound)
        b = jax.random.uniform(kb, (fan_out,), jnp.float32, -bound, bound)
        return w, b

    w_in, b_in = lin(ks[0], latent_dim, channels)
    core = [lin(ks[1 + i], channels, channels) for i in range(n_core)]
    w_out, b_out = lin(ks[n_core + 1], channels, mixer_channels)

    n_slots = n_core + 2
    packed_w = jnp.zeros((n_slots, channels, channels), jnp.float32)
    packed_w = packed_w.at[0, :latent_dim, :].set(w_in)
    for i, (w, _) in enumerate(core):
        packed_w = packed_w.at[1 + i].set(w)
    packed_w = packed_w.at[n_core + 1, :, :mixer_channels].set(w_out)

    n_vec_rows = 3 + 3 * n_core + 1
    n_vec_rows_padded = ((n_vec_rows + 7) // 8) * 8          # -> 16 for n_core=3
    packed_v = jnp.zeros((n_vec_rows_padded, channels), jnp.float32)
    packed_v = packed_v.at[0].set(b_in)                       # b_in
    packed_v = packed_v.at[1].set(jnp.ones((channels,)))      # LayerNorm gain (in)
    # be_in stays zero
    for l, (_, b) in enumerate(core):
        base = 3 + 3 * l
        packed_v = packed_v.at[base].set(b)                   # core bias
        packed_v = packed_v.at[base + 1].set(jnp.ones((channels,)))  # core gain
        # core beta stays zero
    packed_v = packed_v.at[3 + 3 * n_core, :mixer_channels].set(b_out)
    return packed_w, packed_v


if __name__ == "__main__":
    latent_dim = 16
    channels = 32
    mixer_channels = 2
    encoding_channels = 8
    n_core = 3
    batch = 8  # batch * mixer_channels must be divisible by encoding_channels

    key = jax.random.PRNGKey(0)
    kx, kp = jax.random.split(key)
    x = jax.random.normal(kx, (batch, latent_dim), jnp.float32)
    packed_w, packed_v = init_packed_params(kp, latent_dim, channels,
                                            mixer_channels, n_core)

    out = generate_mix(x, packed_w, packed_v,
                       latent_dim=latent_dim, n_core=n_core,
                       mixer_channels=mixer_channels,
                       encoding_channels=encoding_channels)
    out = jax.block_until_ready(out)

    expected_shape = (batch * mixer_channels // encoding_channels, encoding_channels, 1)
    assert out.shape == expected_shape, out.shape
    # softmax over a singleton dim -> exactly ones
    assert bool(jnp.all(jnp.abs(out - 1.0) < 1e-6))
    print("KERNEL_OK")
</pallas_src>

<mosaic_0001>
module attributes {stable_mosaic.version = 11 : i64} {
  func.func @generate_mix_kernel(%arg0: memref<8x16xf32, #tpu.memory_space<vmem>>, %arg1: memref<5x32x32xf32, #tpu.memory_space<vmem>>, %arg2: memref<16x32xf32, #tpu.memory_space<vmem>>, %arg3: memref<1x16xf32, #tpu.memory_space<vmem>>) attributes {dimension_semantics = [], scalar_prefetch = 0 : i64, scratch_operands = 0 : i64, tpu.core_type = #tpu.core_type<tc>} {
    %cst = arith.constant 1.000000e+00 : f32
    %0 = vector.broadcast %cst : f32 to vector<1x16xf32>
    %c0 = arith.constant 0 : index
    %c0_0 = arith.constant 0 : index
    %1 = vector.load %arg3[%c0, %c0_0] : memref<1x16xf32, #tpu.memory_space<vmem>>, vector<1x16xf32>
    tpu.vector_store %arg3[%c0, %c0_0], %0 {strides = array<i32>} : memref<1x16xf32, #tpu.memory_space<vmem>>, vector<1x16xf32>,
    return
  }
}

</mosaic_0001>

<llo_original>
// kernel: tpu_custom_call.1
$region0: #{tpu_custom_call.1}
  #allocation0 [shape = 'u32[]', space=smem, size = 0x4, offset = 0x4, fixed_abs, tag = 'smem constant byte address 0x4 - core index']
  #allocation1 [shape = 'u32[144,128]{1,0:T(1,128)}', space=vmem, size = 0x12000, scoped, tag = 'internal scratch']
  %s0 = inlined_call_operand.hbm [shape: f32[8,16], index: 0, kind: input, shape index: {}]
  %s1 = inlined_call_operand.hbm [shape: f32[5,32,32], index: 1, kind: input, shape index: {}]
  %s2 = inlined_call_operand.hbm [shape: f32[16,32], index: 2, kind: input, shape index: {}]
  %s3 = inlined_call_operand.hbm [shape: f32[1,16], index: 3, kind: output, shape index: {}]
  %s4 = sld [smem:[#allocation0]]
  $region34: #{tpu_custom_call.1} parent=0
    _
  %s6 = ssub.s32 1, %s4
  %s7 = scalar_select 0, %s6, %s4
  $region1: #{tpu_custom_call.1} parent=0
    #allocation2 [shape = 'u8[4096]{0}', space=vmem, size = 0x1000, scoped, tag = 'input window, operand 0, single buffered']
    #allocation3 [shape = 's32[1]{0}', space=sflag, size = 0x4, scoped, tag = 'scoped memory for tpu_custom_call.1']
    #allocation4 [shape = 's32[1]{0}', space=sflag, size = 0x4, scoped, tag = 'scoped memory for tpu_custom_call.1']
    #allocation5 [shape = 'u8[81920]{0}', space=vmem, size = 0x14000, scoped, tag = 'input window, operand 1, single buffered']
    #allocation6 [shape = 's32[1]{0}', space=sflag, size = 0x4, scoped, tag = 'scoped memory for tpu_custom_call.1']
    #allocation7 [shape = 'u8[8192]{0}', space=vmem, size = 0x2000, scoped, tag = 'input window, operand 2, single buffered']
    #allocation8 [shape = 'u8[512]{0}', space=vmem, size = 0x400, scoped, tag = 'output window, operand 0, single buffered']
    %8 = vsyncpa [#allocation3], 0
    %9 = vsyncpa [#allocation6], 0
    %10 = vsyncpa [#allocation4], 0
    // Predicated region
    $region2: #{tpu_custom_call.1} parent=1 // pred_check
      _
    $region3: #{tpu_custom_call.1} parent=1 // pred_check_branch
      %12 = sbr.rel (0) target = $region5
    $region4: #{tpu_custom_call.1} parent=1 // pred_region
      %s14 = ssub.s32 128, 128
      %15 = vsyncadd [#allocation3], %s14
      %s17 = sshll.u32 [#allocation2], 4
      %s18 = int_to_ptr.vmem [resolvable:$true] %s17
      %20 = dma.hbm_to_vmem [thread:$0]  %s0, 128, %s18, [#allocation3]
    $region5: #{tpu_custom_call.1} parent=1 // pred_fallthru
      _
    // Predicated region
    $region6: #{tpu_custom_call.1} parent=1 // pred_check
      _
    $region7: #{tpu_custom_call.1} parent=1 // pred_check_branch
      %22 = sbr.rel (0) target = $region9
    $region8: #{tpu_custom_call.1} parent=1 // pred_region
      %s24 = ssub.s32 2560, 2560
      %25 = vsyncadd [#allocation6], %s24
      %s26 = sshll.u32 [#allocation5], 4
      %s27 = int_to_ptr.vmem [resolvable:$true] %s26
      %32 = dma.hbm_to_vmem [thread:$0]  %s1, 2560, %s27, [#allocation6], 128, 128, 8
    $region9: #{tpu_custom_call.1} parent=1 // pred_fallthru
      _
    // Predicated region
    $region10: #{tpu_custom_call.1} parent=1 // pred_check
      _
    $region11: #{tpu_custom_call.1} parent=1 // pred_check_branch
      %34 = sbr.rel (0) target = $region13
    $region12: #{tpu_custom_call.1} parent=1 // pred_region
      %s36 = ssub.s32 256, 256
      %37 = vsyncadd [#allocation6], %s36
      %s38 = sshll.u32 [#allocation7], 4
      %s39 = int_to_ptr.vmem [resolvable:$true] %s38
      %44 = dma.hbm_to_vmem [thread:$0]  %s2, 256, %s39, [#allocation6], 128, 128, 8
    $region13: #{tpu_custom_call.1} parent=1 // pred_fallthru
      _
    // Predicated region
    $region14: #{tpu_custom_call.1} parent=1 // pred_check
      _
    $region15: #{tpu_custom_call.1} parent=1 // pred_check_branch
      %46 = sbr.rel (0) target = $region17
    $region16: #{tpu_custom_call.1} parent=1 // pred_region
      %47 = dma.done [#allocation3], 128
    $region17: #{tpu_custom_call.1} parent=1 // pred_fallthru
      _
    // Predicated region
    $region18: #{tpu_custom_call.1} parent=1 // pred_check
      _
    $region19: #{tpu_custom_call.1} parent=1 // pred_check_branch
      %49 = sbr.rel (0) target = $region21
    $region20: #{tpu_custom_call.1} parent=1 // pred_region
      %50 = dma.done [#allocation6], 2560
    $region21: #{tpu_custom_call.1} parent=1 // pred_fallthru
      _
    // Predicated region
    $region22: #{tpu_custom_call.1} parent=1 // pred_check
      _
    $region23: #{tpu_custom_call.1} parent=1 // pred_check_branch
      %52 = sbr.rel (0) target = $region25
    $region24: #{tpu_custom_call.1} parent=1 // pred_region
      %53 = dma.done [#allocation6], 256
    $region25: #{tpu_custom_call.1} parent=1 // pred_fallthru
      _
    %vm54 = vcmask 122880
    %55 = vst.msk [vmem:[#allocation8] sm:$0x1] %vm54, 1.0
    // Predicated region
    $region26: #{tpu_custom_call.1} parent=1 // pred_check
      _
    $region27: #{tpu_custom_call.1} parent=1 // pred_check_branch
      %57 = sbr.rel (0) target = $region29
    $region28: #{tpu_custom_call.1} parent=1 // pred_region
      %s59 = ssub.s32 16, 16
      %60 = vsyncadd [#allocation4], %s59
      %s62 = sshll.u32 [#allocation8], 4
      %s63 = int_to_ptr.vmem [resolvable:$true] %s62
      %65 = dma.vmem_to_hbm [thread:$0]  %s63, 16, %s3, [#allocation4]
    $region29: #{tpu_custom_call.1} parent=1 // pred_fallthru
      _
    // Predicated region
    $region30: #{tpu_custom_call.1} parent=1 // pred_check
      _
    $region31: #{tpu_custom_call.1} parent=1 // pred_check_branch
      %67 = sbr.rel (0) target = $region33
    $region32: #{tpu_custom_call.1} parent=1 // pred_region
      %68 = dma.done [#allocation4], 16
    $region33: #{tpu_custom_call.1} parent=1 // pred_fallthru
      _
    %69 = vsyncpa [#allocation3], 1
    %70 = vsyncpa [#allocation6], 1
    %71 = vsyncpa [#allocation4], 1

</llo_original>
